<compile_context>
chip_gen: v7x
topology: tpu7x:2x2x1
jax: 0.10.0
libtpu: 0.0.40
codegen_flags: <defaults>
</compile_context>

<pallas_src>
import jax
import jax.numpy as jnp
from jax.experimental import pallas as pl
from jax.experimental.pallas import tpu as pltpu


LANE = 128          # pad hidden/output feature dims to the lane width
SUBLANE = 8         # batch-tile quantum (f32 sublane count)
MAX_BLOCK_B = 2048  # per-step working set ~5 MiB at 2048 rows -> safely under the
                    # 16 MiB (v5e) default scoped-VMEM limit, far under v6e/v7x budgets


def _round_up(x, m):
    return ((x + m - 1) // m) * m


def actor_mlp_kernel(state_ref,
                     w1_ref, b1_ref, w2_ref, b2_ref, w3_ref, b3_ref,
                     mu_ref):
    """Fused Linear->ReLU->Linear->ReLU->Linear->tanh.

    state arrives as raw f32 (tm, state_dim) and is cast to the matmul dtype
    in-kernel (free VPU slot).  Matmul operands bf16, accumulation f32,
    bias/ReLU/tanh epilogue f32.
    """
    x = state_ref[...].astype(w1_ref.dtype)                        # f32 -> bf16 cast

    h1 = jnp.dot(x, w1_ref[...], preferred_element_type=jnp.float32) + b1_ref[...]
    h1 = jnp.maximum(h1, 0.0)

    h2 = jnp.dot(h1.astype(w2_ref.dtype), w2_ref[...],
                 preferred_element_type=jnp.float32) + b2_ref[...]
    h2 = jnp.maximum(h2, 0.0)

    out = jnp.dot(h2.astype(w3_ref.dtype), w3_ref[...],
                  preferred_element_type=jnp.float32) + b3_ref[...]

    mu_ref[...] = jnp.tanh(out).astype(mu_ref.dtype)


def init_actor_params(key, state_dim, mlp_dims, action_dim):
    """util.orthogonal_init equivalent: orthogonal W, zero b (logical shapes)."""
    dims = [state_dim] + list(mlp_dims) + [action_dim]
    ortho = jax.nn.initializers.orthogonal()
    keys = jax.random.split(key, len(dims) - 1)
    params = {}
    for i, (din, dout) in enumerate(zip(dims[:-1], dims[1:])):
        params[f"w{i + 1}"] = ortho(keys[i], (din, dout), jnp.float32)
        params[f"b{i + 1}"] = jnp.zeros((1, dout), jnp.float32)
    return params


def prepare_actor_params(params, compute_dtype=jnp.bfloat16):
    """Zero-pad output dims to 128 (lane-dense), cast matmul operands to bf16.

    Layer 1's contraction dim stays at the raw state_dim (the state is fed
    un-padded straight from HBM); layers 2/3 consume the 128-padded previous
    activations so their contraction dims are padded too.  Done once, offline.
    """
    prepped = {
        "action_dim": int(params["w3"].shape[1]),
        "state_dim": int(params["w1"].shape[0]),
    }
    for i in (1, 2, 3):
        w = params[f"w{i}"]
        b = params[f"b{i}"].reshape(1, -1)
        din, dout = w.shape
        dinp = din if i == 1 else _round_up(din, LANE)
        doutp = _round_up(dout, LANE)
        wp = jnp.zeros((dinp, doutp), compute_dtype)
        wp = wp.at[:din, :dout].set(w.astype(compute_dtype))
        bp = jnp.zeros((1, doutp), jnp.float32)
        bp = bp.at[:, :dout].set(b.astype(jnp.float32))
        prepped[f"w{i}"] = wp
        prepped[f"b{i}"] = bp
    return prepped


def actor_forward(state, prepped, std, block_b=MAX_BLOCK_B,
                  out_dtype=jnp.bfloat16, slice_output=True):
    """Returns (mu, std) — the parameters of TruncatedNormal(mu, std).

    With slice_output=False the padded (B, 128) mu slab is returned so a
    downstream consumer can fuse the lane slice instead of a separate pass.
    """
    B, state_dim = state.shape
    assert state_dim == prepped["state_dim"]
    A = prepped["action_dim"]
    Ap = prepped["w3"].shape[1]

    # --- balanced batch tiling (tail padding < 8 rows per tile) -----------------
    block_b = max(_round_up(int(block_b), SUBLANE), SUBLANE)   # keep (8,128) rule
    num_tiles = pl.cdiv(B, block_b)
    # v7x megacore: a medium/large batch must yield >=2 grid steps so the
    # "parallel" axis can be sharded over both TensorCores (no-op on v5e/v6e).
    if num_tiles == 1 and B >= 2 * SUBLANE:
        num_tiles = 2
    tm = _round_up(pl.cdiv(B, num_tiles), SUBLANE)
    num_tiles = pl.cdiv(B, tm)

    const = lambda i: (0, 0)   # weights/biases: same block every grid step (VMEM-resident)

    mu_p = pl.pallas_call(
        actor_mlp_kernel,
        out_shape=jax.ShapeDtypeStruct((B, Ap), out_dtype),
        grid=(num_tiles,),
        in_specs=[
            # raw f32 state, tiled over batch; last dim equals the full array dim.
            pl.BlockSpec((tm, state_dim), lambda i: (i, 0)),
            pl.BlockSpec(prepped["w1"].shape, const),
            pl.BlockSpec(prepped["b1"].shape, const),
            pl.BlockSpec(prepped["w2"].shape, const),
            pl.BlockSpec(prepped["b2"].shape, const),
            pl.BlockSpec(prepped["w3"].shape, const),
            pl.BlockSpec(prepped["b3"].shape, const),
        ],
        out_specs=pl.BlockSpec((tm, Ap), lambda i: (i, 0)),      # lane-dense (Ap=128)
        compiler_params=pltpu.CompilerParams(
            dimension_semantics=("parallel",)),                  # megacore on v7x
    )(state,
      prepped["w1"], prepped["b1"],
      prepped["w2"], prepped["b2"],
      prepped["w3"], prepped["b3"])

    mu = mu_p[:, :A] if slice_output else mu_p
    std_out = jnp.full(mu.shape, std, jnp.float32)   # constant broadcast in the wrapper
    return mu, std_out


# ---------------------------------------------------------------- references
def actor_forward_ref_f32(state, params, std):
    """Pure-f32 semantic reference (matches the PyTorch module)."""
    h = jnp.maximum(state @ params["w1"] + params["b1"], 0.0)
    h = jnp.maximum(h @ params["w2"] + params["b2"], 0.0)
    mu = jnp.tanh(h @ params["w3"] + params["b3"])
    return mu, jnp.full_like(mu, std)


def actor_forward_ref_matched(state, prepped, std, out_dtype=jnp.bfloat16):
    """Pure-JAX reference using the same bf16-operand / f32-accumulate math."""
    cdt = prepped["w1"].dtype
    x = state.astype(cdt)
    h = jnp.maximum(jnp.dot(x, prepped["w1"],
                            preferred_element_type=jnp.float32) + prepped["b1"], 0.0)
    h = jnp.maximum(jnp.dot(h.astype(cdt), prepped["w2"],
                            preferred_element_type=jnp.float32) + prepped["b2"], 0.0)
    mu = jnp.tanh(jnp.dot(h.astype(cdt), prepped["w3"],
                          preferred_element_type=jnp.float32) + prepped["b3"])
    mu = mu.astype(out_dtype)
    A = prepped["action_dim"]
    return mu[:, :A], jnp.full((state.shape[0], A), std, jnp.float32)


if __name__ == "__main__":
    # Shapes consistent with the module: state_dim=24, hidden=[32, 32], action_dim=6
    B, STATE_DIM, MLP_DIMS, ACTION_DIM = 8, 24, [32, 32], 6
    STD = 0.2

    key = jax.random.PRNGKey(0)
    k_param, k_state = jax.random.split(key)
    params = init_actor_params(k_param, STATE_DIM, MLP_DIMS, ACTION_DIM)
    prepped = prepare_actor_params(params)
    state = jax.random.normal(k_state, (B, STATE_DIM), dtype=jnp.float32)

    mu, std_out = actor_forward(state, prepped, STD)
    jax.block_until_ready((mu, std_out))
    assert mu.shape == (B, ACTION_DIM) and std_out.shape == (B, ACTION_DIM)

    # Same-math check (bf16 operands / f32 accumulation / bf16 output).
    mu_m, std_m = actor_forward_ref_matched(state, prepped, STD)
    assert jnp.allclose(mu.astype(jnp.float32), mu_m.astype(jnp.float32),
                        atol=1e-2), "mu mismatch vs matched reference"
    assert jnp.allclose(std_out, std_m, atol=1e-6), "std mismatch"

    # Semantic check against the full-f32 PyTorch-equivalent math
    # (looser tolerance: bf16 matmul operands + bf16 output).
    mu_f, std_f = actor_forward_ref_f32(state, params, STD)
    assert jnp.allclose(mu.astype(jnp.float32), mu_f, atol=3e-2), \
        "mu mismatch vs f32 reference"
    assert jnp.allclose(std_out, std_f, atol=1e-6), "std mismatch vs f32 reference"

    # Larger, non-divisible batch: exercises balanced tiling + partial last block.
    B2 = 603
    state2 = jax.random.normal(jax.random.PRNGKey(1), (B2, STATE_DIM), jnp.float32)
    mu2, std2 = actor_forward(state2, prepped, STD, block_b=256)
    jax.block_until_ready((mu2, std2))
    mu2_f, _ = actor_forward_ref_f32(state2, params, STD)
    assert mu2.shape == (B2, ACTION_DIM)
    assert jnp.allclose(mu2.astype(jnp.float32), mu2_f, atol=5e-2), \
        "mu mismatch vs f32 reference (large batch)"

    print("KERNEL_OK")
</pallas_src>

<mosaic_0001>
module attributes {stable_mosaic.version = 11 : i64} {
  func.func @actor_mlp_kernel(%arg0: i32, %arg1: memref<8x24xf32, #tpu.memory_space<vmem>>, %arg2: memref<24x128xbf16, #tpu.memory_space<vmem>>, %arg3: memref<1x128xf32, #tpu.memory_space<vmem>>, %arg4: memref<128x128xbf16, #tpu.memory_space<vmem>>, %arg5: memref<1x128xf32, #tpu.memory_space<vmem>>, %arg6: memref<128x128xbf16, #tpu.memory_space<vmem>>, %arg7: memref<1x128xf32, #tpu.memory_space<vmem>>, %arg8: memref<8x128xbf16, #tpu.memory_space<vmem>>) attributes {dimension_semantics = [#tpu.dimension_semantics<parallel>], iteration_bounds = array<i64: 1>, scalar_prefetch = 0 : i64, scratch_operands = 0 : i64, tpu.core_type = #tpu.core_type<tc>, window_params = [{transform_indices = @transform_0, window_bounds = array<i64: 8, 24>}, {pipeline_mode = #tpu.pipeline_mode<synchronous>, transform_indices = @transform_1, window_bounds = array<i64: 24, 128>}, {pipeline_mode = #tpu.pipeline_mode<synchronous>, transform_indices = @transform_2, window_bounds = array<i64: 1, 128>}, {pipeline_mode = #tpu.pipeline_mode<synchronous>, transform_indices = @transform_3, window_bounds = array<i64: 128, 128>}, {pipeline_mode = #tpu.pipeline_mode<synchronous>, transform_indices = @transform_4, window_bounds = array<i64: 1, 128>}, {pipeline_mode = #tpu.pipeline_mode<synchronous>, transform_indices = @transform_5, window_bounds = array<i64: 128, 128>}, {pipeline_mode = #tpu.pipeline_mode<synchronous>, transform_indices = @transform_6, window_bounds = array<i64: 1, 128>}, {transform_indices = @transform_7, window_bounds = array<i64: 8, 128>}]} {
    %c0 = arith.constant 0 : index
    %c0_0 = arith.constant 0 : index
    %0 = vector.load %arg1[%c0, %c0_0] : memref<8x24xf32, #tpu.memory_space<vmem>>, vector<8x24xf32>
    %1 = arith.truncf %0 : vector<8x24xf32> to vector<8x24xbf16>
    %c0_1 = arith.constant 0 : index
    %c0_2 = arith.constant 0 : index
    %2 = vector.load %arg2[%c0_1, %c0_2] : memref<24x128xbf16, #tpu.memory_space<vmem>>, vector<24x128xbf16>
    %cst = arith.constant dense<0.000000e+00> : vector<8x128xf32>
    %3 = tpu.matmul %1, %2, %cst {dimension_numbers = #tpu.dot_dimension_numbers<[1], [0], [0], [1], [0, 0, 1, 1], [], []>} : vector<8x24xbf16>, vector<24x128xbf16>, vector<8x128xf32> -> vector<8x128xf32>
    %c0_3 = arith.constant 0 : index
    %c0_4 = arith.constant 0 : index
    %4 = vector.load %arg3[%c0_3, %c0_4] : memref<1x128xf32, #tpu.memory_space<vmem>>, vector<1x128xf32>
    %5 = vector.broadcast %4 : vector<1x128xf32> to vector<8x128xf32>
    %6 = arith.addf %3, %5 : vector<8x128xf32>
    %cst_5 = arith.constant 0.000000e+00 : f32
    %7 = vector.broadcast %cst_5 : f32 to vector<8x128xf32>
    %8 = arith.maximumf %6, %7 : vector<8x128xf32>
    %9 = arith.truncf %8 : vector<8x128xf32> to vector<8x128xbf16>
    %c0_6 = arith.constant 0 : index
    %c0_7 = arith.constant 0 : index
    %10 = vector.load %arg4[%c0_6, %c0_7] : memref<128x128xbf16, #tpu.memory_space<vmem>>, vector<128x128xbf16>
    %cst_8 = arith.constant dense<0.000000e+00> : vector<8x128xf32>
    %11 = tpu.matmul %9, %10, %cst_8 {dimension_numbers = #tpu.dot_dimension_numbers<[1], [0], [0], [1], [0, 0, 1, 1], [], []>} : vector<8x128xbf16>, vector<128x128xbf16>, vector<8x128xf32> -> vector<8x128xf32>
    %c0_9 = arith.constant 0 : index
    %c0_10 = arith.constant 0 : index
    %12 = vector.load %arg5[%c0_9, %c0_10] : memref<1x128xf32, #tpu.memory_space<vmem>>, vector<1x128xf32>
    %13 = vector.broadcast %12 : vector<1x128xf32> to vector<8x128xf32>
    %14 = arith.addf %11, %13 : vector<8x128xf32>
    %cst_11 = arith.constant 0.000000e+00 : f32
    %15 = vector.broadcast %cst_11 : f32 to vector<8x128xf32>
    %16 = arith.maximumf %14, %15 : vector<8x128xf32>
    %17 = arith.truncf %16 : vector<8x128xf32> to vector<8x128xbf16>
    %c0_12 = arith.constant 0 : index
    %c0_13 = arith.constant 0 : index
    %18 = vector.load %arg6[%c0_12, %c0_13] : memref<128x128xbf16, #tpu.memory_space<vmem>>, vector<128x128xbf16>
    %cst_14 = arith.constant dense<0.000000e+00> : vector<8x128xf32>
    %19 = tpu.matmul %17, %18, %cst_14 {dimension_numbers = #tpu.dot_dimension_numbers<[1], [0], [0], [1], [0, 0, 1, 1], [], []>} : vector<8x128xbf16>, vector<128x128xbf16>, vector<8x128xf32> -> vector<8x128xf32>
    %c0_15 = arith.constant 0 : index
    %c0_16 = arith.constant 0 : index
    %20 = vector.load %arg7[%c0_15, %c0_16] : memref<1x128xf32, #tpu.memory_space<vmem>>, vector<1x128xf32>
    %21 = vector.broadcast %20 : vector<1x128xf32> to vector<8x128xf32>
    %22 = arith.addf %19, %21 : vector<8x128xf32>
    %23 = math.tanh %22 : vector<8x128xf32>
    %24 = arith.truncf %23 : vector<8x128xf32> to vector<8x128xbf16>
    %c0_17 = arith.constant 0 : index
    %c0_18 = arith.constant 0 : index
    %25 = vector.load %arg8[%c0_17, %c0_18] : memref<8x128xbf16, #tpu.memory_space<vmem>>, vector<8x128xbf16>
    tpu.vector_store %arg8[%c0_17, %c0_18], %24 {strides = array<i32>} : memref<8x128xbf16, #tpu.memory_space<vmem>>, vector<8x128xbf16>,
    return
  }
  func.func @transform_0(%arg0: i32) -> (i32, i32) {
    %c0_i32 = arith.constant 0 : i32
    %c0_i32_0 = arith.constant 0 : i32
    return %arg0, %c0_i32 : i32, i32
  }
  func.func @transform_1(%arg0: i32) -> (i32, i32) {
    %c0_i32 = arith.constant 0 : i32
    %c0_i32_0 = arith.constant 0 : i32
    %c0_i32_1 = arith.constant 0 : i32
    return %c0_i32, %c0_i32_0 : i32, i32
  }
  func.func @transform_2(%arg0: i32) -> (i32, i32) {
    %c0_i32 = arith.constant 0 : i32
    %c0_i32_0 = arith.constant 0 : i32
    %c0_i32_1 = arith.constant 0 : i32
    return %c0_i32, %c0_i32_0 : i32, i32
  }
  func.func @transform_3(%arg0: i32) -> (i32, i32) {
    %c0_i32 = arith.constant 0 : i32
    %c0_i32_0 = arith.constant 0 : i32
    %c0_i32_1 = arith.constant 0 : i32
    return %c0_i32, %c0_i32_0 : i32, i32
  }
  func.func @transform_4(%arg0: i32) -> (i32, i32) {
    %c0_i32 = arith.constant 0 : i32
    %c0_i32_0 = arith.constant 0 : i32
    %c0_i32_1 = arith.constant 0 : i32
    return %c0_i32, %c0_i32_0 : i32, i32
  }
  func.func @transform_5(%arg0: i32) -> (i32, i32) {
    %c0_i32 = arith.constant 0 : i32
    %c0_i32_0 = arith.constant 0 : i32
    %c0_i32_1 = arith.constant 0 : i32
    return %c0_i32, %c0_i32_0 : i32, i32
  }
  func.func @transform_6(%arg0: i32) -> (i32, i32) {
    %c0_i32 = arith.constant 0 : i32
    %c0_i32_0 = arith.constant 0 : i32
    %c0_i32_1 = arith.constant 0 : i32
    return %c0_i32, %c0_i32_0 : i32, i32
  }
  func.func @transform_7(%arg0: i32) -> (i32, i32) {
    %c0_i32 = arith.constant 0 : i32
    %c0_i32_0 = arith.constant 0 : i32
    return %arg0, %c0_i32 : i32, i32
  }
}

</mosaic_0001>

<llo_original>
// kernel: tpu_custom_call.1
$region0: #{tpu_custom_call.1}
  #allocation0 [shape = 'u32[]', space=smem, size = 0x4, offset = 0x4, fixed_abs, tag = 'smem constant byte address 0x4 - core index']
  #allocation1 [shape = 'u32[144,128]{1,0:T(1,128)}', space=vmem, size = 0x12000, scoped, tag = 'internal scratch']
  %s0 = inlined_call_operand.hbm [shape: f32[8,24], index: 0, kind: input, shape index: {}]
  %s1 = inlined_call_operand.hbm [shape: bf16[24,128], index: 1, kind: input, shape index: {}]
  %s2 = inlined_call_operand.vmem [shape: f32[1,128], index: 2, kind: input, shape index: {}]
  %s3 = inlined_call_operand.hbm [shape: bf16[128,128], index: 3, kind: input, shape index: {}]
  %s4 = inlined_call_operand.vmem [shape: f32[1,128], index: 4, kind: input, shape index: {}]
  %s5 = inlined_call_operand.hbm [shape: bf16[128,128], index: 5, kind: input, shape index: {}]
  %s6 = inlined_call_operand.vmem [shape: f32[1,128], index: 6, kind: input, shape index: {}]
  %s7 = inlined_call_operand.hbm [shape: bf16[8,128], index: 7, kind: output, shape index: {}]
  %s8 = sld [smem:[#allocation0]]
  $region54: #{tpu_custom_call.1} parent=0
    _
  %s10 = ssub.s32 1, %s8
  %s11 = scalar_select 0, %s10, %s8
  $region1: #{tpu_custom_call.1} parent=0
    #allocation2 [shape = 'u8[4096]{0}', space=vmem, size = 0x1000, scoped, tag = 'input window, operand 0, single buffered']
    #allocation3 [shape = 's32[1]{0}', space=sflag, size = 0x4, scoped, tag = 'scoped memory for tpu_custom_call.1']
    #allocation4 [shape = 's32[1]{0}', space=sflag, size = 0x4, scoped, tag = 'scoped memory for tpu_custom_call.1']
    #allocation5 [shape = 'u8[6144]{0}', space=vmem, size = 0x1800, scoped, tag = 'input window, operand 1, single buffered']
    #allocation6 [shape = 's32[1]{0}', space=sflag, size = 0x4, scoped, tag = 'scoped memory for tpu_custom_call.1']
    #allocation7 [shape = 'u8[32768]{0}', space=vmem, size = 0x8000, scoped, tag = 'input window, operand 3, single buffered']
    #allocation8 [shape = 'u8[32768]{0}', space=vmem, size = 0x8000, scoped, tag = 'input window, operand 5, single buffered']
    #allocation9 [shape = 's32[1]{0}', space=sflag, size = 0x4, scoped, tag = 'scoped memory for tpu_custom_call.1']
    #allocation10 [shape = 'u8[2048]{0}', space=vmem, size = 0x800, scoped, tag = 'output window, operand 0, single buffered']
    %12 = vsyncpa [#allocation3], 0
    %13 = vsyncpa [#allocation6], 0
    %14 = vsyncpa [#allocation9], 0
    %15 = vsyncpa [#allocation4], 0
    // Predicated region
    $region2: #{tpu_custom_call.1} parent=1 // pred_check
      _
    $region3: #{tpu_custom_call.1} parent=1 // pred_check_branch
      %17 = sbr.rel (0) target = $region5
    $region4: #{tpu_custom_call.1} parent=1 // pred_region
      %s19 = ssub.s32 128, 128
      %20 = vsyncadd [#allocation3], %s19
      %s22 = sshll.u32 [#allocation2], 4
      %s23 = int_to_ptr.vmem [resolvable:$true] %s22
      %25 = dma.hbm_to_vmem [thread:$0]  %s0, 128, %s23, [#allocation3]
    $region5: #{tpu_custom_call.1} parent=1 // pred_fallthru
      _
    // Predicated region
    $region6: #{tpu_custom_call.1} parent=1 // pred_check
      _
    $region7: #{tpu_custom_call.1} parent=1 // pred_check_branch
      %27 = sbr.rel (0) target = $region9
    $region8: #{tpu_custom_call.1} parent=1 // pred_region
      %s29 = ssub.s32 192, 192
      %30 = vsyncadd [#allocation6], %s29
      %s31 = sshll.u32 [#allocation5], 4
      %s32 = int_to_ptr.vmem [resolvable:$true] %s31
      %37 = dma.hbm_to_vmem [thread:$0]  %s1, 192, %s32, [#allocation6], 64, 64, 4
    $region9: #{tpu_custom_call.1} parent=1 // pred_fallthru
      _
    // Predicated region
    $region10: #{tpu_custom_call.1} parent=1 // pred_check
      _
    $region11: #{tpu_custom_call.1} parent=1 // pred_check_branch
      %39 = sbr.rel (0) target = $region13
    $region12: #{tpu_custom_call.1} parent=1 // pred_region
      _
    $region13: #{tpu_custom_call.1} parent=1 // pred_fallthru
      _
    // Predicated region
    $region14: #{tpu_custom_call.1} parent=1 // pred_check
      _
    $region15: #{tpu_custom_call.1} parent=1 // pred_check_branch
      %41 = sbr.rel (0) target = $region17
    $region16: #{tpu_custom_call.1} parent=1 // pred_region
      %s43 = ssub.s32 1024, 1024
      %44 = vsyncadd [#allocation6], %s43
      %s45 = sshll.u32 [#allocation7], 4
      %s46 = int_to_ptr.vmem [resolvable:$true] %s45
      %51 = dma.hbm_to_vmem [thread:$0]  %s3, 1024, %s46, [#allocation6], 64, 64, 4
    $region17: #{tpu_custom_call.1} parent=1 // pred_fallthru
      _
    // Predicated region
    $region18: #{tpu_custom_call.1} parent=1 // pred_check
      _
    $region19: #{tpu_custom_call.1} parent=1 // pred_check_branch
      %53 = sbr.rel (0) target = $region21
    $region20: #{tpu_custom_call.1} parent=1 // pred_region
      _
    $region21: #{tpu_custom_call.1} parent=1 // pred_fallthru
      _
    // Predicated region
    $region22: #{tpu_custom_call.1} parent=1 // pred_check
      _
    $region23: #{tpu_custom_call.1} parent=1 // pred_check_branch
      %55 = sbr.rel (0) target = $region25
    $region24: #{tpu_custom_call.1} parent=1 // pred_region
      %s57 = ssub.s32 1024, 1024
      %58 = vsyncadd [#allocation9], %s57
      %s59 = sshll.u32 [#allocation8], 4
      %s60 = int_to_ptr.vmem [resolvable:$true] %s59
      %65 = dma.hbm_to_vmem [thread:$0]  %s5, 1024, %s60, [#allocation9], 64, 64, 4
    $region25: #{tpu_custom_call.1} parent=1 // pred_fallthru
      _
    // Predicated region
    $region26: #{tpu_custom_call.1} parent=1 // pred_check
      _
    $region27: #{tpu_custom_call.1} parent=1 // pred_check_branch
      %67 = sbr.rel (0) target = $region29
    $region28: #{tpu_custom_call.1} parent=1 // pred_region
      _
    $region29: #{tpu_custom_call.1} parent=1 // pred_fallthru
      _
    // Predicated region
    $region30: #{tpu_custom_call.1} parent=1 // pred_check
      _
    $region31: #{tpu_custom_call.1} parent=1 // pred_check_branch
      %69 = sbr.rel (0) target = $region33
    $region32: #{tpu_custom_call.1} parent=1 // pred_region
      %70 = dma.done [#allocation3], 128
    $region33: #{tpu_custom_call.1} parent=1 // pred_fallthru
      _
    // Predicated region
    $region34: #{tpu_custom_call.1} parent=1 // pred_check
      _
    $region35: #{tpu_custom_call.1} parent=1 // pred_check_branch
      %72 = sbr.rel (0) target = $region37
    $region36: #{tpu_custom_call.1} parent=1 // pred_region
      %73 = dma.done [#allocation6], 192
    $region37: #{tpu_custom_call.1} parent=1 // pred_fallthru
      _
    // Predicated region
    $region38: #{tpu_custom_call.1} parent=1 // pred_check
      _
    $region39: #{tpu_custom_call.1} parent=1 // pred_check_branch
      %75 = sbr.rel (0) target = $region41
    $region40: #{tpu_custom_call.1} parent=1 // pred_region
      %76 = dma.done [#allocation6], 1024
    $region41: #{tpu_custom_call.1} parent=1 // pred_fallthru
      _
    // Predicated region
    $region42: #{tpu_custom_call.1} parent=1 // pred_check
      _
    $region43: #{tpu_custom_call.1} parent=1 // pred_check_branch
      %78 = sbr.rel (0) target = $region45
    $region44: #{tpu_custom_call.1} parent=1 // pred_region
      %79 = dma.done [#allocation9], 1024
    $region45: #{tpu_custom_call.1} parent=1 // pred_fallthru
      _
    %v81 = vld [vmem:[#allocation2] sm:$0xff]
    %v82 = vpack.c.bf16 %v81, %v81
    %v83 = vld [vmem:[#allocation5] sm:$0xf]
    %v84 = vld [vmem:[#allocation5 + $0x4] sm:$0xf]
    %v85 = vld [vmem:[#allocation5 + $0x8] sm:$0xf]
    %v86 = vld [vmem:[%s2] sm:$0x1]
    %v88 = vlaneseq
    %v89 = vshrl.u32 %v88, 7
    %v90 = vsub.s32 0, %v89
    %v91 = vrot.slane %v86, %v90
    %v96 = vunpack.c.l.b16 %v83
    %v97 = vunpack.c.l.b16 %v84
    %v98 = vunpack.c.l.b16 %v85
    %v99 = vpack.c.b16 %v97, %v96
    %v100 = vpack.c.b16 %v98, %v98
    %vm102 = vcmask 195584
    %v104 = vsel %vm102, %v82, 0
    %vm106 = vcmask 1043456
    %v108 = vsel %vm106, %v100, 0
    %110 = vmatprep.subr.bf16.mxu0 0
    %111 = vmatpush1.bf16.msra.mxu0 %v99
    %112 = vmatprep.subr.bf16.mxu0 0
    %113 = vmatpush1.bf16.msra.mxu0 %v108
    %114 = vmatprep.subr.bf16.mxu0 0
    %115 = vmatpush1.bf16.msra.mxu0 0
    %116 = vmatprep.subr.bf16.mxu0 0
    %117 = vmatpush1.bf16.msra.mxu0 0
    %118 = vmatprep.subr.bf16.mxu0 0
    %119 = vmatpush1.bf16.msra.mxu0 0
    %120 = vmatprep.subr.bf16.mxu0 0
    %121 = vmatpush1.bf16.msra.mxu0 0
    %122 = vmatprep.subr.bf16.mxu0 0
    %123 = vmatpush1.bf16.msra.mxu0 0
    %124 = vmatprep.subr.bf16.mxu0 0
    %125 = vmatpush1.bf16.msra.mxu0 0
    %126 = vmatprep.subr.bf16.mxu0 0
    %127 = vmatpush1.bf16.msra.mxu0 0
    %128 = vmatprep.subr.bf16.mxu0 0
    %129 = vmatpush1.bf16.msra.mxu0 0
    %130 = vmatprep.subr.bf16.mxu0 0
    %131 = vmatpush1.bf16.msra.mxu0 0
    %132 = vmatprep.subr.bf16.mxu0 0
    %133 = vmatpush1.bf16.msra.mxu0 0
    %134 = vmatprep.subr.bf16.mxu0 0
    %135 = vmatpush1.bf16.msra.mxu0 0
    %136 = vmatprep.subr.bf16.mxu0 0
    %137 = vmatpush1.bf16.msra.mxu0 0
    %138 = vmatprep.subr.bf16.mxu0 0
    %139 = vmatpush1.bf16.msra.mxu0 0
    %140 = vmatprep.subr.bf16.mxu0 0
    %141 = vmatpush1.bf16.msra.mxu0 0
    %142 = vmatprep.mubr.bf16.mxu0 0
    %143 = vmatmul.mubr.bf16.gmra.mrb[0].mxu0 %v104
    %v144 = vpop.f32.mrb[0].mxu0
    %v145 = vadd.f32 %v91, %v144
    %v146 = vpop.f32.mrb[0].mxu0
    %v147 = vpop.f32.mrb[0].mxu0
    %v148 = vpop.f32.mrb[0].mxu0
    %149 = vdwg.mxu0
    %v150 = vmax.f32 %v145, 0.0
    %v151 = vpack.c.bf16 %v150, %v150
    %v152 = vld [vmem:[#allocation7] sm:$0xf]
    %v153 = vld [vmem:[#allocation7 + $0x4] sm:$0xf]
    %v154 = vld [vmem:[#allocation7 + $0x8] sm:$0xf]
    %v155 = vld [vmem:[#allocation7 + $0xc] sm:$0xf]
    %v156 = vld [vmem:[#allocation7 + $0x10] sm:$0xf]
    %v157 = vld [vmem:[#allocation7 + $0x14] sm:$0xf]
    %v158 = vld [vmem:[#allocation7 + $0x18] sm:$0xf]
    %v159 = vld [vmem:[#allocation7 + $0x1c] sm:$0xf]
    %v160 = vld [vmem:[#allocation7 + $0x20] sm:$0xf]
    %v161 = vld [vmem:[#allocation7 + $0x24] sm:$0xf]
    %v162 = vld [vmem:[#allocation7 + $0x28] sm:$0xf]
    %v163 = vld [vmem:[#allocation7 + $0x2c] sm:$0xf]
    %v164 = vld [vmem:[#allocation7 + $0x30] sm:$0xf]
    %v165 = vld [vmem:[#allocation7 + $0x34] sm:$0xf]
    %v166 = vld [vmem:[#allocation7 + $0x38] sm:$0xf]
    %v167 = vld [vmem:[#allocation7 + $0x3c] sm:$0xf]
    %v168 = vld [vmem:[%s4] sm:$0x1]
    %v170 = vlaneseq
    %v171 = vshrl.u32 %v170, 7
    %v172 = vsub.s32 0, %v171
    %v173 = vrot.slane %v168, %v172
    %v191 = vunpack.c.l.b16 %v152
    %v192 = vunpack.c.l.b16 %v153
    %v193 = vunpack.c.l.b16 %v154
    %v194 = vunpack.c.l.b16 %v155
    %v195 = vunpack.c.l.b16 %v156
    %v196 = vunpack.c.l.b16 %v157
    %v197 = vunpack.c.l.b16 %v158
    %v198 = vunpack.c.l.b16 %v159
    %v199 = vunpack.c.l.b16 %v160
    %v200 = vunpack.c.l.b16 %v161
    %v201 = vunpack.c.l.b16 %v162
    %v202 = vunpack.c.l.b16 %v163
    %v203 = vunpack.c.l.b16 %v164
    %v204 = vunpack.c.l.b16 %v165
    %v205 = vunpack.c.l.b16 %v166
    %v206 = vunpack.c.l.b16 %v167
    %v207 = vpack.c.b16 %v192, %v191
    %v208 = vpack.c.b16 %v194, %v193
    %v209 = vpack.c.b16 %v196, %v195
    %v210 = vpack.c.b16 %v198, %v197
    %v211 = vpack.c.b16 %v200, %v199
    %v212 = vpack.c.b16 %v202, %v201
    %v213 = vpack.c.b16 %v204, %v203
    %v214 = vpack.c.b16 %v206, %v205
    %223 = vmatprep.subr.bf16.mxu0 0
    %224 = vmatpush1.bf16.msra.mxu0 %v207
    %225 = vmatprep.subr.bf16.mxu0 0
    %226 = vmatpush1.bf16.msra.mxu0 %v208
    %227 = vmatprep.subr.bf16.mxu0 0
    %228 = vmatpush1.bf16.msra.mxu0 %v209
    %229 = vmatprep.subr.bf16.mxu0 0
    %230 = vmatpush1.bf16.msra.mxu0 %v210
    %231 = vmatprep.subr.bf16.mxu0 0
    %232 = vmatpush1.bf16.msra.mxu0 %v211
    %233 = vmatprep.subr.bf16.mxu0 0
    %234 = vmatpush1.bf16.msra.mxu0 %v212
    %235 = vmatprep.subr.bf16.mxu0 0
    %236 = vmatpush1.bf16.msra.mxu0 %v213
    %237 = vmatprep.subr.bf16.mxu0 0
    %238 = vmatpush1.bf16.msra.mxu0 %v214
    %239 = vmatprep.subr.bf16.mxu0 0
    %240 = vmatpush1.bf16.msra.mxu0 0
    %241 = vmatprep.subr.bf16.mxu0 0
    %242 = vmatpush1.bf16.msra.mxu0 0
    %243 = vmatprep.subr.bf16.mxu0 0
    %244 = vmatpush1.bf16.msra.mxu0 0
    %245 = vmatprep.subr.bf16.mxu0 0
    %246 = vmatpush1.bf16.msra.mxu0 0
    %247 = vmatprep.subr.bf16.mxu0 0
    %248 = vmatpush1.bf16.msra.mxu0 0
    %249 = vmatprep.subr.bf16.mxu0 0
    %250 = vmatpush1.bf16.msra.mxu0 0
    %251 = vmatprep.subr.bf16.mxu0 0
    %252 = vmatpush1.bf16.msra.mxu0 0
    %253 = vmatprep.subr.bf16.mxu0 0
    %254 = vmatpush1.bf16.msra.mxu0 0
    %255 = vmatprep.mubr.bf16.mxu0 0
    %256 = vmatmul.mubr.bf16.gmra.mrb[0].mxu0 %v151
    %v257 = vpop.f32.mrb[0].mxu0
    %v258 = vadd.f32 %v173, %v257
    %v259 = vpop.f32.mrb[0].mxu0
    %v260 = vpop.f32.mrb[0].mxu0
    %v261 = vpop.f32.mrb[0].mxu0
    %262 = vdwg.mxu0
    %v263 = vmax.f32 %v258, 0.0
    %v264 = vpack.c.bf16 %v263, %v263
    %v265 = vld [vmem:[#allocation8] sm:$0xf]
    %v266 = vld [vmem:[#allocation8 + $0x4] sm:$0xf]
    %v267 = vld [vmem:[#allocation8 + $0x8] sm:$0xf]
    %v268 = vld [vmem:[#allocation8 + $0xc] sm:$0xf]
    %v269 = vld [vmem:[#allocation8 + $0x10] sm:$0xf]
    %v270 = vld [vmem:[#allocation8 + $0x14] sm:$0xf]
    %v271 = vld [vmem:[#allocation8 + $0x18] sm:$0xf]
    %v272 = vld [vmem:[#allocation8 + $0x1c] sm:$0xf]
    %v273 = vld [vmem:[#allocation8 + $0x20] sm:$0xf]
    %v274 = vld [vmem:[#allocation8 + $0x24] sm:$0xf]
    %v275 = vld [vmem:[#allocation8 + $0x28] sm:$0xf]
    %v276 = vld [vmem:[#allocation8 + $0x2c] sm:$0xf]
    %v277 = vld [vmem:[#allocation8 + $0x30] sm:$0xf]
    %v278 = vld [vmem:[#allocation8 + $0x34] sm:$0xf]
    %v279 = vld [vmem:[#allocation8 + $0x38] sm:$0xf]
    %v280 = vld [vmem:[#allocation8 + $0x3c] sm:$0xf]
    %v281 = vld [vmem:[%s6] sm:$0x1]
    %v283 = vlaneseq
    %v284 = vshrl.u32 %v283, 7
    %v285 = vsub.s32 0, %v284
    %v286 = vrot.slane %v281, %v285
    %v304 = vunpack.c.l.b16 %v265
    %v305 = vunpack.c.l.b16 %v266
    %v306 = vunpack.c.l.b16 %v267
    %v307 = vunpack.c.l.b16 %v268
    %v308 = vunpack.c.l.b16 %v269
    %v309 = vunpack.c.l.b16 %v270
    %v310 = vunpack.c.l.b16 %v271
    %v311 = vunpack.c.l.b16 %v272
    %v312 = vunpack.c.l.b16 %v273
    %v313 = vunpack.c.l.b16 %v274
    %v314 = vunpack.c.l.b16 %v275
    %v315 = vunpack.c.l.b16 %v276
    %v316 = vunpack.c.l.b16 %v277
    %v317 = vunpack.c.l.b16 %v278
    %v318 = vunpack.c.l.b16 %v279
    %v319 = vunpack.c.l.b16 %v280
    %v320 = vpack.c.b16 %v305, %v304
    %v321 = vpack.c.b16 %v307, %v306
    %v322 = vpack.c.b16 %v309, %v308
    %v323 = vpack.c.b16 %v311, %v310
    %v324 = vpack.c.b16 %v313, %v312
    %v325 = vpack.c.b16 %v315, %v314
    %v326 = vpack.c.b16 %v317, %v316
    %v327 = vpack.c.b16 %v319, %v318
    %336 = vmatprep.subr.bf16.mxu0 0
    %337 = vmatpush1.bf16.msra.mxu0 %v320
    %338 = vmatprep.subr.bf16.mxu0 0
    %339 = vmatpush1.bf16.msra.mxu0 %v321
    %340 = vmatprep.subr.bf16.mxu0 0
    %341 = vmatpush1.bf16.msra.mxu0 %v322
    %342 = vmatprep.subr.bf16.mxu0 0
    %343 = vmatpush1.bf16.msra.mxu0 %v323
    %344 = vmatprep.subr.bf16.mxu0 0
    %345 = vmatpush1.bf16.msra.mxu0 %v324
    %346 = vmatprep.subr.bf16.mxu0 0
    %347 = vmatpush1.bf16.msra.mxu0 %v325
    %348 = vmatprep.subr.bf16.mxu0 0
    %349 = vmatpush1.bf16.msra.mxu0 %v326
    %350 = vmatprep.subr.bf16.mxu0 0
    %351 = vmatpush1.bf16.msra.mxu0 %v327
    %352 = vmatprep.subr.bf16.mxu0 0
    %353 = vmatpush1.bf16.msra.mxu0 0
    %354 = vmatprep.subr.bf16.mxu0 0
    %355 = vmatpush1.bf16.msra.mxu0 0
    %356 = vmatprep.subr.bf16.mxu0 0
    %357 = vmatpush1.bf16.msra.mxu0 0
    %358 = vmatprep.subr.bf16.mxu0 0
    %359 = vmatpush1.bf16.msra.mxu0 0
    %360 = vmatprep.subr.bf16.mxu0 0
    %361 = vmatpush1.bf16.msra.mxu0 0
    %362 = vmatprep.subr.bf16.mxu0 0
    %363 = vmatpush1.bf16.msra.mxu0 0
    %364 = vmatprep.subr.bf16.mxu0 0
    %365 = vmatpush1.bf16.msra.mxu0 0
    %366 = vmatprep.subr.bf16.mxu0 0
    %367 = vmatpush1.bf16.msra.mxu0 0
    %368 = vmatprep.mubr.bf16.mxu0 0
    %369 = vmatmul.mubr.bf16.gmra.mrb[0].mxu0 %v264
    %v370 = vpop.f32.mrb[0].mxu0
    %v371 = vadd.f32 %v286, %v370
    %v372 = vpop.f32.mrb[0].mxu0
    %v373 = vpop.f32.mrb[0].mxu0
    %v374 = vpop.f32.mrb[0].mxu0
    %375 = vdwg.mxu0
    %v376 = vtanh.pop %v371
    %v377 = vpack.c.bf16 %v376, %v376
    %378 = vst [vmem:[#allocation10] sm:$0xf] %v377
    // Predicated region
    $region46: #{tpu_custom_call.1} parent=1 // pred_check
      _
    $region47: #{tpu_custom_call.1} parent=1 // pred_check_branch
      %380 = sbr.rel (0) target = $region49
    $region48: #{tpu_custom_call.1} parent=1 // pred_region
      %s382 = ssub.s32 64, 64
      %383 = vsyncadd [#allocation4], %s382
      %s385 = sshll.u32 [#allocation10], 4
      %s386 = int_to_ptr.vmem [resolvable:$true] %s385
      %388 = dma.vmem_to_hbm [thread:$0]  %s386, 64, %s7, [#allocation4]
    $region49: #{tpu_custom_call.1} parent=1 // pred_fallthru
      _
    // Predicated region
    $region50: #{tpu_custom_call.1} parent=1 // pred_check
      _
    $region51: #{tpu_custom_call.1} parent=1 // pred_check_branch
      %390 = sbr.rel (0) target = $region53
    $region52: #{tpu_custom_call.1} parent=1 // pred_region
      %391 = dma.done [#allocation4], 64
    $region53: #{tpu_custom_call.1} parent=1 // pred_fallthru
      _
    %392 = vsyncpa [#allocation3], 1
    %393 = vsyncpa [#allocation6], 1
    %394 = vsyncpa [#allocation9], 1
    %395 = vsyncpa [#allocation4], 1

</llo_original>
